<compile_context>
chip_gen: v7x
topology: tpu7x:2x2x1
jax: 0.10.0
libtpu: 0.0.40
codegen_flags: <defaults>
</compile_context>

<pallas_src>
import functools

import jax
import jax.numpy as jnp
import numpy as np
from jax.experimental import pallas as pl
from jax.experimental.pallas import tpu as pltpu

# Full 2-D taps (reference only).
SOBEL_X_3 = ((-1.0, 0.0, 1.0), (-2.0, 0.0, 2.0), (-1.0, 0.0, 1.0))
SOBEL_Y_3 = ((-1.0, -2.0, -1.0), (0.0, 0.0, 0.0), (1.0, 2.0, 1.0))
SOBEL_X_5 = ((-1.0, -2.0, 0.0, 2.0, 1.0),
             (-4.0, -8.0, 0.0, 8.0, 4.0),
             (-6.0, -12.0, 0.0, 12.0, 6.0),
             (-4.0, -8.0, 0.0, 8.0, 4.0),
             (-1.0, -2.0, 0.0, 2.0, 1.0))
SOBEL_Y_5 = ((-1.0, -4.0, -6.0, -4.0, -1.0),
             (-2.0, -8.0, -12.0, -8.0, -2.0),
             (0.0, 0.0, 0.0, 0.0, 0.0),
             (2.0, 8.0, 12.0, 8.0, 2.0),
             (1.0, 4.0, 6.0, 4.0, 1.0))

# Separable taps (cross-correlation convention, matches F.conv2d):
#   sobel_x = outer(smooth, deriv), sobel_y = outer(deriv, smooth)
_TAPS = {
    3: {"deriv": (-1.0, 0.0, 1.0), "smooth": (1.0, 2.0, 1.0)},
    5: {"deriv": (-1.0, -2.0, 0.0, 2.0, 1.0), "smooth": (1.0, 4.0, 6.0, 4.0, 1.0)},
}


# ----------------------------- kernel helpers -----------------------------

def _shift(a, axis, off):
    """out[..., j, ...] = a[..., j+off, ...] along `axis`, zero outside range."""
    if off == 0:
        return a
    axis = axis % a.ndim
    n = a.shape[axis]
    zshape = list(a.shape)
    zshape[axis] = abs(off)
    z = jnp.zeros(tuple(zshape), a.dtype)
    if off > 0:
        body = jax.lax.slice_in_dim(a, off, n, axis=axis)
        return jnp.concatenate([body, z], axis=axis)
    body = jax.lax.slice_in_dim(a, 0, n + off, axis=axis)
    return jnp.concatenate([z, body], axis=axis)


def _acc(acc, v, c):
    """Accumulate c*v into acc; +/-1 taps use add/sub; no zeros init."""
    if c == 0.0:
        return acc
    if acc is None:
        if c == 1.0:
            return v
        if c == -1.0:
            return -v
        return c * v
    if c == 1.0:
        return acc + v
    if c == -1.0:
        return acc - v
    return acc + c * v


def _sobel_block(x, ksize):
    """Separable Sobel edge magnitude on a (tbc, H, W) f32 block, zero padding."""
    deriv = _TAPS[ksize]["deriv"]
    smooth = _TAPS[ksize]["smooth"]
    p = ksize // 2

    # Horizontal (lane-axis) pass: each shifted slice is computed once and fed
    # to BOTH accumulators.
    d = None  # horizontal derivative
    s = None  # horizontal smoothing
    for b in range(ksize):
        v = _shift(x, axis=-1, off=b - p)
        d = _acc(d, v, deriv[b])
        s = _acc(s, v, smooth[b])

    # Vertical (sublane-axis) pass.
    gx = None
    gy = None
    for r in range(ksize):
        off = r - p
        if smooth[r] != 0.0:
            gx = _acc(gx, _shift(d, axis=-2, off=off), smooth[r])
        if deriv[r] != 0.0:
            gy = _acc(gy, _shift(s, axis=-2, off=off), deriv[r])

    return jnp.sqrt(gx * gx + gy * gy + 1e-6)


def _sobel_kernel(x_ref, o_ref, *, ksize):
    # x_ref / o_ref: (tbc, H, W)
    o_ref[...] = _sobel_block(x_ref[...], ksize)


def _sobel_gray_kernel(x_ref, o_ref, *, ksize):
    # x_ref: (tb, 3, H, W) -> fused grayscale blend; o_ref: (tb, H, W)
    xb = x_ref[...]
    gray = 0.299 * xb[:, 0] + 0.587 * xb[:, 1] + 0.114 * xb[:, 2]
    o_ref[...] = _sobel_block(gray, ksize)


# ------------------------------- host wrapper ------------------------------

def _vmem_budget():
    """(vmem_limit_bytes or None, min grid steps) per TPU generation."""
    try:
        kind = jax.devices()[0].device_kind.lower()
    except Exception:
        kind = ""
    if "v7" in kind:
        return 48 * 1024 * 1024, 4      # v7x: 64 MiB physical VMEM, 2 TCs
    if "v5" in kind or "v6" in kind:
        return 64 * 1024 * 1024, 2      # v5e/v6e: 128 MiB physical VMEM
    return None, 2                      # unknown: keep compiler default limit


def _pick_block(n, per_item_bytes, vmem_limit, min_steps):
    """Leading-dim items per grid step, sized to fill the VMEM budget while
    keeping at least `min_steps` grid steps when n permits."""
    budget = vmem_limit if vmem_limit is not None else 16 * 1024 * 1024
    cap = max(1, budget // max(per_item_bytes, 1))
    if n >= min_steps:
        cap = min(cap, pl.cdiv(n, min_steps))
    return max(1, min(cap, n))


def _compiler_params(vmem_limit):
    kwargs = dict(dimension_semantics=("parallel",))
    if vmem_limit is not None:
        kwargs["vmem_limit_bytes"] = vmem_limit
    return pltpu.CompilerParams(**kwargs)


def sobel_filter(x, *, ksize=3, use_grayscale=False):
    """Pallas equivalent of SobelFilter.forward. x: (B, C, H, W) -> (B, C', H, W)."""
    if ksize not in (3, 5):
        raise ValueError(f"Unsupported kernel size: {ksize}. Use 3 or 5.")

    x = x.astype(jnp.float32)
    B, C, H, W = x.shape
    vmem_limit, min_steps = _vmem_budget()
    chan_bytes = H * W * 4

    if use_grayscale and C == 3:
        # Grayscale blend fused into the kernel: read 3 channels per block,
        # blend in VMEM, run Sobel once (no extra HBM pass for the blend).
        n = B
        per_item = (2 * 3 + 2 + 4) * chan_bytes   # 2x in(3ch) + 2x out + temps
        tb = _pick_block(n, per_item, vmem_limit, min_steps)
        out = pl.pallas_call(
            functools.partial(_sobel_gray_kernel, ksize=ksize),
            out_shape=jax.ShapeDtypeStruct((n, H, W), jnp.float32),
            grid=(pl.cdiv(n, tb),),
            in_specs=[pl.BlockSpec((tb, 3, H, W), lambda i: (i, 0, 0, 0))],
            out_specs=pl.BlockSpec((tb, H, W), lambda i: (i, 0, 0)),
            compiler_params=_compiler_params(vmem_limit),
        )(x)
        return out.reshape(B, 1, H, W)

    # Per-channel path: flatten (B, C) -> N independent (H, W) images.
    N = B * C
    xr = x.reshape(N, H, W)                       # free reshape, no HBM traffic
    per_item = (2 + 2 + 4) * chan_bytes           # 2x in + 2x out + live temps
    tbc = _pick_block(N, per_item, vmem_limit, min_steps)

    out = pl.pallas_call(
        functools.partial(_sobel_kernel, ksize=ksize),
        out_shape=jax.ShapeDtypeStruct((N, H, W), jnp.float32),
        grid=(pl.cdiv(N, tbc),),                  # masked partial last block OK
        in_specs=[pl.BlockSpec((tbc, H, W), lambda i: (i, 0, 0))],
        out_specs=pl.BlockSpec((tbc, H, W), lambda i: (i, 0, 0)),
        compiler_params=_compiler_params(vmem_limit),
    )(xr)
    return out.reshape(B, C, H, W)


# ------------------------------- reference ---------------------------------

def _sobel_reference(x, ksize=3):
    """Plain-JAX reference: explicit zero-padded 2-D stencil in f32."""
    wx = np.array(SOBEL_X_3 if ksize == 3 else SOBEL_X_5, np.float32)
    wy = np.array(SOBEL_Y_3 if ksize == 3 else SOBEL_Y_5, np.float32)
    p = ksize // 2
    B, C, H, W = x.shape
    xp = jnp.pad(x.astype(jnp.float32), ((0, 0), (0, 0), (p, p), (p, p)))
    gx = jnp.zeros((B, C, H, W), jnp.float32)
    gy = jnp.zeros((B, C, H, W), jnp.float32)
    for r in range(ksize):
        for b in range(ksize):
            win = xp[:, :, r:r + H, b:b + W]
            if wx[r, b] != 0.0:
                gx = gx + float(wx[r, b]) * win
            if wy[r, b] != 0.0:
                gy = gy + float(wy[r, b]) * win
    return jnp.sqrt(gx * gx + gy * gy + 1e-6)


if __name__ == "__main__":
    key = jax.random.PRNGKey(0)
    k1, k2 = jax.random.split(key)

    # Test 1: ksize=3 (module defaults), B=2, C=4, 16x16.
    x = jax.random.normal(k1, (2, 4, 16, 16), dtype=jnp.float32)
    out = jax.block_until_ready(sobel_filter(x, ksize=3, use_grayscale=False))
    ref = _sobel_reference(x, ksize=3)
    assert out.shape == (2, 4, 16, 16)
    assert jnp.allclose(out, ref, atol=1e-4, rtol=1e-4), \
        float(jnp.max(jnp.abs(out - ref)))

    # Test 2: ksize=5 with fused grayscale path (C==3 collapses to 1 channel).
    x2 = jax.random.normal(k2, (2, 3, 16, 16), dtype=jnp.float32)
    out2 = jax.block_until_ready(sobel_filter(x2, ksize=5, use_grayscale=True))
    x2g = 0.299 * x2[:, 0:1] + 0.587 * x2[:, 1:2] + 0.114 * x2[:, 2:3]
    ref2 = _sobel_reference(x2g, ksize=5)
    assert out2.shape == (2, 1, 16, 16)
    assert jnp.allclose(out2, ref2, atol=1e-3, rtol=1e-3), \
        float(jnp.max(jnp.abs(out2 - ref2)))

    print("KERNEL_OK")
</pallas_src>

<mosaic_0001>
module attributes {stable_mosaic.version = 11 : i64} {
  func.func @_sobel_kernel(%arg0: i32, %arg1: memref<4x16x16xf32, #tpu.memory_space<vmem>>, %arg2: memref<4x16x16xf32, #tpu.memory_space<vmem>>) attributes {dimension_semantics = [#tpu.dimension_semantics<parallel>], iteration_bounds = array<i64: 2>, scalar_prefetch = 0 : i64, scratch_operands = 0 : i64, tpu.core_type = #tpu.core_type<tc>, window_params = [{transform_indices = @transform_0, window_bounds = array<i64: 4, 16, 16>}, {transform_indices = @transform_1, window_bounds = array<i64: 4, 16, 16>}]} {
    %c0 = arith.constant 0 : index
    %c0_0 = arith.constant 0 : index
    %c0_1 = arith.constant 0 : index
    %0 = vector.load %arg1[%c0, %c0_0, %c0_1] : memref<4x16x16xf32, #tpu.memory_space<vmem>>, vector<4x16x16xf32>
    %cst = arith.constant 0.000000e+00 : f32
    %1 = vector.broadcast %cst : f32 to vector<4x16x1xf32>
    %2 = vector.extract_strided_slice %0 {offsets = [0, 0, 0], sizes = [4, 16, 15], strides = [1, 1, 1]} : vector<4x16x16xf32> to vector<4x16x15xf32>
    %3 = tpu.concatenate %1, %2 in 2 : vector<4x16x1xf32>, vector<4x16x15xf32> -> vector<4x16x16xf32>
    %cst_2 = arith.constant 0.000000e+00 : f32
    %4 = vector.broadcast %cst_2 : f32 to vector<4x16x16xf32>
    %5 = arith.subf %4, %3 : vector<4x16x16xf32>
    %cst_3 = arith.constant 2.000000e+00 : f32
    %6 = vector.broadcast %cst_3 : f32 to vector<4x16x16xf32>
    %7 = arith.mulf %6, %0 : vector<4x16x16xf32>
    %8 = arith.addf %3, %7 : vector<4x16x16xf32>
    %cst_4 = arith.constant 0.000000e+00 : f32
    %9 = vector.broadcast %cst_4 : f32 to vector<4x16x1xf32>
    %10 = vector.extract_strided_slice %0 {offsets = [0, 0, 1], sizes = [4, 16, 15], strides = [1, 1, 1]} : vector<4x16x16xf32> to vector<4x16x15xf32>
    %11 = tpu.concatenate %10, %9 in 2 : vector<4x16x15xf32>, vector<4x16x1xf32> -> vector<4x16x16xf32>
    %12 = arith.addf %5, %11 : vector<4x16x16xf32>
    %13 = arith.addf %8, %11 : vector<4x16x16xf32>
    %cst_5 = arith.constant 0.000000e+00 : f32
    %14 = vector.broadcast %cst_5 : f32 to vector<4x1x16xf32>
    %15 = vector.extract_strided_slice %12 {offsets = [0, 0, 0], sizes = [4, 15, 16], strides = [1, 1, 1]} : vector<4x16x16xf32> to vector<4x15x16xf32>
    %16 = tpu.concatenate %14, %15 in 1 : vector<4x1x16xf32>, vector<4x15x16xf32> -> vector<4x16x16xf32>
    %cst_6 = arith.constant 0.000000e+00 : f32
    %17 = vector.broadcast %cst_6 : f32 to vector<4x1x16xf32>
    %18 = vector.extract_strided_slice %13 {offsets = [0, 0, 0], sizes = [4, 15, 16], strides = [1, 1, 1]} : vector<4x16x16xf32> to vector<4x15x16xf32>
    %19 = tpu.concatenate %17, %18 in 1 : vector<4x1x16xf32>, vector<4x15x16xf32> -> vector<4x16x16xf32>
    %cst_7 = arith.constant 0.000000e+00 : f32
    %20 = vector.broadcast %cst_7 : f32 to vector<4x16x16xf32>
    %21 = arith.subf %20, %19 : vector<4x16x16xf32>
    %cst_8 = arith.constant 2.000000e+00 : f32
    %22 = vector.broadcast %cst_8 : f32 to vector<4x16x16xf32>
    %23 = arith.mulf %22, %12 : vector<4x16x16xf32>
    %24 = arith.addf %16, %23 : vector<4x16x16xf32>
    %cst_9 = arith.constant 0.000000e+00 : f32
    %25 = vector.broadcast %cst_9 : f32 to vector<4x1x16xf32>
    %26 = vector.extract_strided_slice %12 {offsets = [0, 1, 0], sizes = [4, 15, 16], strides = [1, 1, 1]} : vector<4x16x16xf32> to vector<4x15x16xf32>
    %27 = tpu.concatenate %26, %25 in 1 : vector<4x15x16xf32>, vector<4x1x16xf32> -> vector<4x16x16xf32>
    %28 = arith.addf %24, %27 : vector<4x16x16xf32>
    %cst_10 = arith.constant 0.000000e+00 : f32
    %29 = vector.broadcast %cst_10 : f32 to vector<4x1x16xf32>
    %30 = vector.extract_strided_slice %13 {offsets = [0, 1, 0], sizes = [4, 15, 16], strides = [1, 1, 1]} : vector<4x16x16xf32> to vector<4x15x16xf32>
    %31 = tpu.concatenate %30, %29 in 1 : vector<4x15x16xf32>, vector<4x1x16xf32> -> vector<4x16x16xf32>
    %32 = arith.addf %21, %31 : vector<4x16x16xf32>
    %33 = arith.mulf %28, %28 : vector<4x16x16xf32>
    %34 = arith.mulf %32, %32 : vector<4x16x16xf32>
    %35 = arith.addf %33, %34 : vector<4x16x16xf32>
    %cst_11 = arith.constant 9.99999997E-7 : f32
    %36 = vector.broadcast %cst_11 : f32 to vector<4x16x16xf32>
    %37 = arith.addf %35, %36 : vector<4x16x16xf32>
    %38 = math.sqrt %37 : vector<4x16x16xf32>
    %c0_12 = arith.constant 0 : index
    %c0_13 = arith.constant 0 : index
    %c0_14 = arith.constant 0 : index
    %39 = vector.load %arg2[%c0_12, %c0_13, %c0_14] : memref<4x16x16xf32, #tpu.memory_space<vmem>>, vector<4x16x16xf32>
    tpu.vector_store %arg2[%c0_12, %c0_13, %c0_14], %38 {strides = array<i32>} : memref<4x16x16xf32, #tpu.memory_space<vmem>>, vector<4x16x16xf32>,
    return
  }
  func.func @transform_0(%arg0: i32) -> (i32, i32, i32) {
    %c0_i32 = arith.constant 0 : i32
    %c0_i32_0 = arith.constant 0 : i32
    %c0_i32_1 = arith.constant 0 : i32
    return %arg0, %c0_i32, %c0_i32_0 : i32, i32, i32
  }
  func.func @transform_1(%arg0: i32) -> (i32, i32, i32) {
    %c0_i32 = arith.constant 0 : i32
    %c0_i32_0 = arith.constant 0 : i32
    %c0_i32_1 = arith.constant 0 : i32
    return %arg0, %c0_i32, %c0_i32_0 : i32, i32, i32
  }
}

</mosaic_0001>

<llo_original>
// kernel: tpu_custom_call.1
$region0: #{tpu_custom_call.1}
  #allocation0 [shape = 'u32[]', space=smem, size = 0x4, offset = 0x4, fixed_abs, tag = 'smem constant byte address 0x4 - core index']
  #allocation1 [shape = 'u32[144,128]{1,0:T(1,128)}', space=vmem, size = 0x12000, scoped, tag = 'internal scratch']
  %s0 = inlined_call_operand.hbm [shape: f32[8,16,16], index: 0, kind: input, shape index: {}]
  %s1 = inlined_call_operand.hbm [shape: f32[8,16,16], index: 1, kind: output, shape index: {}]
  %s2 = sld [smem:[#allocation0]]
  $region41: #{tpu_custom_call.1} parent=0
    _
  %s4 = ssub.s32 1, %s2
  %s5 = scalar_select 0, %s4, %s2
  $region1: #{tpu_custom_call.1} parent=0
    #allocation2 [shape = 'u8[65536]{0}', space=vmem, size = 0x10000, scoped, tag = 'input window, operand 0']
    #allocation3 [shape = 's32[2]{0}', space=sflag, size = 0x8, scoped, tag = 'scoped memory for tpu_custom_call.1']
    #allocation4 [shape = 's32[2]{0}', space=sflag, size = 0x8, scoped, tag = 'scoped memory for tpu_custom_call.1']
    #allocation5 [shape = 'u8[65536]{0}', space=vmem, size = 0x10000, scoped, tag = 'output window, operand 0']
    %6 = vsyncpa [#allocation3], 0
    %s7 = scalar_lea.sflag [#allocation3], 1
    %8 = vsyncpa %s7, 0
    %9 = vsyncpa [#allocation4], 0
    %s10 = scalar_lea.sflag [#allocation4], 1
    %11 = vsyncpa %s10, 0
    loop: start=0, step=1, limit=4
    $region2: #{tpu_custom_call.1} parent=1 // loop_pre_header
      _
    $region3: #{tpu_custom_call.1} parent=1 // loop_header
      %s13 = sphi 0, %s17
      %p14 = scmp.ge.s32.totalorder %s13, 4
      %s23 = sphi 0, %s25
      %s26 = sphi 0, %s23
      %s27 = sphi 0, %s26
      %s43 = sphi 0, %s27
      %s49 = sphi 0, %s51
      %s52 = sphi 0, %s49
      %s53 = sphi 0, %s52
      %s69 = sphi 0, %s53
    $region4: #{tpu_custom_call.1} parent=1 // loop_header_branch
      %16 = sbr.rel (%p14) target = $region8
    $region5: #{tpu_custom_call.1} parent=1 // loop_body
      %s18 = ssub.s32 %s13, 1
      %s19 = ssub.s32 %s13, 2
      %s20 = sadd.s32 %s13, 1
      %s21 = ssub.s32 %s13, %s20
      %p22 = scmp.eq.s32.totalorder %s21, 0
      %s24 = sadd.s32 %s23, 1
      %s25 = scalar_select %p22, %s23, %s24
      %p28 = pneg %p22
      %p29 = scmp.eq.s32.totalorder %s13, 1
      %p30 = por %p28, %p29
      %p31 = scmp.ne.s32.totalorder %s23, %s26
      %p32 = scmp.eq.s32.totalorder %s13, 0
      %p33 = por %p31, %p32
      %p34 = scmp.ne.s32.totalorder %s23, %s26
      %p35 = scmp.eq.s32.totalorder %s18, 1
      %p36 = por %p34, %p35
      %p37 = scmp.ne.s32.totalorder %s26, %s27
      %p38 = scmp.eq.s32.totalorder %s18, 0
      %p39 = por %p37, %p38
      %p40 = scmp.ne.s32.totalorder %s26, %s27
      %p41 = scmp.eq.s32.totalorder %s19, 1
      %p42 = por %p40, %p41
      %p44 = scmp.ne.s32.totalorder %s27, %s43
      %p45 = scmp.eq.s32.totalorder %s19, 0
      %p46 = por %p44, %p45
      %s47 = ssub.s32 %s13, %s20
      %p48 = scmp.eq.s32.totalorder %s47, 0
      %s50 = sadd.s32 %s49, 1
      %s51 = scalar_select %p48, %s49, %s50
      %p54 = pneg %p48
      %p55 = scmp.eq.s32.totalorder %s13, 1
      %p56 = por %p54, %p55
      %p57 = scmp.ne.s32.totalorder %s49, %s52
      %p58 = scmp.eq.s32.totalorder %s13, 0
      %p59 = por %p57, %p58
      %p60 = scmp.ne.s32.totalorder %s49, %s52
      %p61 = scmp.eq.s32.totalorder %s18, 1
      %p62 = por %p60, %p61
      %p63 = scmp.ne.s32.totalorder %s52, %s53
      %p64 = scmp.eq.s32.totalorder %s18, 0
      %p65 = por %p63, %p64
      %p66 = scmp.ne.s32.totalorder %s52, %s53
      %p67 = scmp.eq.s32.totalorder %s19, 1
      %p68 = por %p66, %p67
      %p70 = scmp.ne.s32.totalorder %s53, %s69
      %p71 = scmp.eq.s32.totalorder %s19, 0
      %p72 = por %p70, %p71
      %p73 = scmp.le.s32.totalorder 1, %s13
      %p74 = scmp.lt.s32.totalorder %s13, 3
      %p75 = pnand %p73, %p74
      %p76 = pneg %p75
      // Predicated region
      $region9: #{tpu_custom_call.1} parent=5 // pred_check
        _
      $region10: #{tpu_custom_call.1} parent=5 // pred_check_branch
        %78 = sbr.rel (%p75) target = $region12
      $region11: #{tpu_custom_call.1} parent=5 // pred_region
        %s79 = ssub.s32 %s13, 1
      $region12: #{tpu_custom_call.1} parent=5 // pred_fallthru
        _
      %p80 = scmp.lt.s32.totalorder %s13, 2
      // Predicated region
      $region13: #{tpu_custom_call.1} parent=5 // pred_check
        %p81 = pneg %p80
      $region14: #{tpu_custom_call.1} parent=5 // pred_check_branch
        %83 = sbr.rel (%p81) target = $region16
      $region15: #{tpu_custom_call.1} parent=5 // pred_region
        // Predicated region
        $region17: #{tpu_custom_call.1} parent=15 // pred_check
          %p84 = pneg %p33
        $region18: #{tpu_custom_call.1} parent=15 // pred_check_branch
          %86 = sbr.rel (%p84) target = $region20
        $region19: #{tpu_custom_call.1} parent=15 // pred_region
          %s87 = sand.u32 %s23, 1
          %s88 = scalar_lea.sflag [#allocation3], %s87
          %s89 = sand.u32 %s23, 1
          %s90 = smul.addr %s89, 64
          %s91 = scalar_lea.vmem [#allocation2], %s90
          %s92 = smul.u32 4, %s13
          %s94 = ssub.s32 1024, 1024
          %95 = vsyncadd %s88, %s94
          %s96 = smul.addr %s92, 2
          %s97 = smul.addr %s96, 128
          %s98 = scalar_lea.hbm %s0, %s97
          %s99 = sshll.u32 %s91, 4
          %s100 = int_to_ptr.vmem [resolvable:$true] %s99
          %105 = dma.hbm_to_vmem [thread:$0]  %s98, 1024, %s100, %s88, 128, 128, 8
        $region20: #{tpu_custom_call.1} parent=15 // pred_fallthru
          _
      $region16: #{tpu_custom_call.1} parent=5 // pred_fallthru
        _
      %p106 = scmp.le.s32.totalorder 1, %s13
      %p107 = scmp.lt.s32.totalorder %s13, 3
      %p108 = pnand %p106, %p107
      %p109 = pneg %p108
      // Predicated region
      $region21: #{tpu_custom_call.1} parent=5 // pred_check
        _
      $region22: #{tpu_custom_call.1} parent=5 // pred_check_branch
        %111 = sbr.rel (%p108) target = $region24
      $region23: #{tpu_custom_call.1} parent=5 // pred_region
        %s112 = ssub.s32 %s13, 1
        %s113 = sand.u32 %s26, 1
        %s114 = scalar_lea.sflag [#allocation3], %s113
        %s115 = sand.u32 %s26, 1
        %s116 = smul.addr %s115, 64
        %s117 = scalar_lea.vmem [#allocation2], %s116
        // Predicated region
        $region25: #{tpu_custom_call.1} parent=23 // pred_check
          %p118 = pneg %p39
        $region26: #{tpu_custom_call.1} parent=23 // pred_check_branch
          %120 = sbr.rel (%p118) target = $region28
        $region27: #{tpu_custom_call.1} parent=23 // pred_region
          %121 = dma.done %s114, 1024
        $region28: #{tpu_custom_call.1} parent=23 // pred_fallthru
          _
        %s122 = sand.u32 %s26, 1
        %s123 = scalar_lea.sflag [#allocation3], %s122
        %s124 = sand.u32 %s26, 1
        %s125 = smul.addr %s124, 64
        %s126 = scalar_lea.vmem [#allocation2], %s125
        %p127 = pneg %p39
        %p128 = pneg %p36
        %p129 = pneg %p65
        %p130 = pneg %p62
        %s131 = sand.u32 %s52, 1
        %s132 = scalar_lea.sflag [#allocation4], %s131
        %s133 = sand.u32 %s52, 1
        %s134 = smul.addr %s133, 64
        %s135 = scalar_lea.vmem [#allocation5], %s134
        %s136 = smul.u32 4, %s18
        %s137 = smul.u32 4, %s18
        %v138 = vld [vmem:[%s117] sm:$0xff]
        %v139 = vld [vmem:[%s117 + $0x8] sm:$0xff]
        %v140 = vld [vmem:[%s117 + $0x10] sm:$0xff]
        %v141 = vld [vmem:[%s117 + $0x18] sm:$0xff]
        %v142 = vld [vmem:[%s117 + $0x20] sm:$0xff]
        %v143 = vld [vmem:[%s117 + $0x28] sm:$0xff]
        %v144 = vld [vmem:[%s117 + $0x30] sm:$0xff]
        %v145 = vld [vmem:[%s117 + $0x38] sm:$0xff]
        %154 = vrot.lane.b32.xlu0 %v138, 1
        %v155 = vpop.permute.xlu0 %154
        %156 = vrot.lane.b32.xlu0 %v139, 1
        %v157 = vpop.permute.xlu0 %156
        %158 = vrot.lane.b32.xlu0 %v140, 1
        %v159 = vpop.permute.xlu0 %158
        %160 = vrot.lane.b32.xlu0 %v141, 1
        %v161 = vpop.permute.xlu0 %160
        %162 = vrot.lane.b32.xlu0 %v142, 1
        %v163 = vpop.permute.xlu0 %162
        %164 = vrot.lane.b32.xlu0 %v143, 1
        %v165 = vpop.permute.xlu0 %164
        %166 = vrot.lane.b32.xlu0 %v144, 1
        %v167 = vpop.permute.xlu0 %166
        %168 = vrot.lane.b32.xlu0 %v145, 1
        %v169 = vpop.permute.xlu0 %168
        %vm178 = vcmask 7168
        %v179 = vsel %vm178, 0.0, %v155
        %v180 = vsel %vm178, 0.0, %v157
        %v181 = vsel %vm178, 0.0, %v159
        %v182 = vsel %vm178, 0.0, %v161
        %v183 = vsel %vm178, 0.0, %v163
        %v184 = vsel %vm178, 0.0, %v165
        %v185 = vsel %vm178, 0.0, %v167
        %v186 = vsel %vm178, 0.0, %v169
        %v187 = vsub.f32 0.0, %v179
        %v188 = vsub.f32 0.0, %v180
        %v189 = vsub.f32 0.0, %v181
        %v190 = vsub.f32 0.0, %v182
        %v191 = vsub.f32 0.0, %v183
        %v192 = vsub.f32 0.0, %v184
        %v193 = vsub.f32 0.0, %v185
        %v194 = vsub.f32 0.0, %v186
        %v195 = vmul.f32 %v138, 2.0
        %v196 = vmul.f32 %v139, 2.0
        %v197 = vmul.f32 %v140, 2.0
        %v198 = vmul.f32 %v141, 2.0
        %v199 = vmul.f32 %v142, 2.0
        %v200 = vmul.f32 %v143, 2.0
        %v201 = vmul.f32 %v144, 2.0
        %v202 = vmul.f32 %v145, 2.0
        %v203 = vadd.f32 %v179, %v195
        %v204 = vadd.f32 %v180, %v196
        %v205 = vadd.f32 %v181, %v197
        %v206 = vadd.f32 %v182, %v198
        %v207 = vadd.f32 %v183, %v199
        %v208 = vadd.f32 %v184, %v200
        %v209 = vadd.f32 %v185, %v201
        %v210 = vadd.f32 %v186, %v202
        %211 = vrot.lane.b32.xlu0 %v138, 127
        %v212 = vpop.permute.xlu0 %211
        %213 = vrot.lane.b32.xlu0 %v139, 127
        %v214 = vpop.permute.xlu0 %213
        %215 = vrot.lane.b32.xlu0 %v140, 127
        %v216 = vpop.permute.xlu0 %215
        %217 = vrot.lane.b32.xlu0 %v141, 127
        %v218 = vpop.permute.xlu0 %217
        %219 = vrot.lane.b32.xlu0 %v142, 127
        %v220 = vpop.permute.xlu0 %219
        %221 = vrot.lane.b32.xlu0 %v143, 127
        %v222 = vpop.permute.xlu0 %221
        %223 = vrot.lane.b32.xlu0 %v144, 127
        %v224 = vpop.permute.xlu0 %223
        %225 = vrot.lane.b32.xlu0 %v145, 127
        %v226 = vpop.permute.xlu0 %225
        %vm235 = vcmask 121856
        %v236 = vsel %vm235, %v212, 0.0
        %v237 = vsel %vm235, %v214, 0.0
        %v238 = vsel %vm235, %v216, 0.0
        %v239 = vsel %vm235, %v218, 0.0
        %v240 = vsel %vm235, %v220, 0.0
        %v241 = vsel %vm235, %v222, 0.0
        %v242 = vsel %vm235, %v224, 0.0
        %v243 = vsel %vm235, %v226, 0.0
        %v244 = vadd.f32 %v187, %v236
        %v245 = vadd.f32 %v188, %v237
        %v246 = vadd.f32 %v189, %v238
        %v247 = vadd.f32 %v190, %v239
        %v248 = vadd.f32 %v191, %v240
        %v249 = vadd.f32 %v192, %v241
        %v250 = vadd.f32 %v193, %v242
        %v251 = vadd.f32 %v194, %v243
        %v252 = vadd.f32 %v203, %v236
        %v253 = vadd.f32 %v204, %v237
        %v254 = vadd.f32 %v205, %v238
        %v255 = vadd.f32 %v206, %v239
        %v256 = vadd.f32 %v207, %v240
        %v257 = vadd.f32 %v208, %v241
        %v258 = vadd.f32 %v209, %v242
        %v259 = vadd.f32 %v210, %v243
        %vm268 = vcmask 1040384
        %v269 = vrot.slane %v244, 7
        %v270 = vrot.slane %v245, 7
        %v271 = vsel %vm268, %v269, %v270
        %v272 = vrot.slane %v246, 7
        %v273 = vrot.slane %v247, 7
        %v274 = vsel %vm268, %v272, %v273
        %v275 = vrot.slane %v248, 7
        %v276 = vrot.slane %v249, 7
        %v277 = vsel %vm268, %v275, %v276
        %v278 = vrot.slane %v250, 7
        %v279 = vrot.slane %v251, 7
        %v280 = vsel %vm268, %v278, %v279
        %v289 = vsel %vm268, 0.0, %v269
        %v290 = vsel %vm268, 0.0, %v272
        %v291 = vsel %vm268, 0.0, %v275
        %v292 = vsel %vm268, 0.0, %v278
        %v301 = vrot.slane %v252, 7
        %v302 = vrot.slane %v253, 7
        %v303 = vsel %vm268, %v301, %v302
        %v304 = vrot.slane %v254, 7
        %v305 = vrot.slane %v255, 7
        %v306 = vsel %vm268, %v304, %v305
        %v307 = vrot.slane %v256, 7
        %v308 = vrot.slane %v257, 7
        %v309 = vsel %vm268, %v307, %v308
        %v310 = vrot.slane %v258, 7
        %v311 = vrot.slane %v259, 7
        %v312 = vsel %vm268, %v310, %v311
        %v321 = vsel %vm268, 0.0, %v301
        %v322 = vsel %vm268, 0.0, %v304
        %v323 = vsel %vm268, 0.0, %v307
        %v324 = vsel %vm268, 0.0, %v310
        %v325 = vsub.f32 0.0, %v321
        %v326 = vsub.f32 0.0, %v303
        %v327 = vsub.f32 0.0, %v322
        %v328 = vsub.f32 0.0, %v306
        %v329 = vsub.f32 0.0, %v323
        %v330 = vsub.f32 0.0, %v309
        %v331 = vsub.f32 0.0, %v324
        %v332 = vsub.f32 0.0, %v312
        %v333 = vmul.f32 %v244, 2.0
        %v334 = vmul.f32 %v245, 2.0
        %v335 = vmul.f32 %v246, 2.0
        %v336 = vmul.f32 %v247, 2.0
        %v337 = vmul.f32 %v248, 2.0
        %v338 = vmul.f32 %v249, 2.0
        %v339 = vmul.f32 %v250, 2.0
        %v340 = vmul.f32 %v251, 2.0
        %v341 = vadd.f32 %v289, %v333
        %v342 = vadd.f32 %v271, %v334
        %v343 = vadd.f32 %v290, %v335
        %v344 = vadd.f32 %v274, %v336
        %v345 = vadd.f32 %v291, %v337
        %v346 = vadd.f32 %v277, %v338
        %v347 = vadd.f32 %v292, %v339
        %v348 = vadd.f32 %v280, %v340
        %vm349 = vcmask 1046528
        %v350 = vrot.slane %v244, 1
        %v351 = vrot.slane %v245, 1
        %v352 = vsel %vm349, %v350, %v351
        %v353 = vrot.slane %v246, 1
        %v354 = vrot.slane %v247, 1
        %v355 = vsel %vm349, %v353, %v354
        %v356 = vrot.slane %v248, 1
        %v357 = vrot.slane %v249, 1
        %v358 = vsel %vm349, %v356, %v357
        %v359 = vrot.slane %v250, 1
        %v360 = vrot.slane %v251, 1
        %v361 = vsel %vm349, %v359, %v360
        %v370 = vsel %vm349, %v351, 0.0
        %v371 = vsel %vm349, %v354, 0.0
        %v372 = vsel %vm349, %v357, 0.0
        %v373 = vsel %vm349, %v360, 0.0
        %v374 = vadd.f32 %v341, %v352
        %v375 = vadd.f32 %v342, %v370
        %v376 = vadd.f32 %v343, %v355
        %v377 = vadd.f32 %v344, %v371
        %v378 = vadd.f32 %v345, %v358
        %v379 = vadd.f32 %v346, %v372
        %v380 = vadd.f32 %v347, %v361
        %v381 = vadd.f32 %v348, %v373
        %v382 = vrot.slane %v252, 1
        %v383 = vrot.slane %v253, 1
        %v384 = vsel %vm349, %v382, %v383
        %v385 = vrot.slane %v254, 1
        %v386 = vrot.slane %v255, 1
        %v387 = vsel %vm349, %v385, %v386
        %v388 = vrot.slane %v256, 1
        %v389 = vrot.slane %v257, 1
        %v390 = vsel %vm349, %v388, %v389
        %v391 = vrot.slane %v258, 1
        %v392 = vrot.slane %v259, 1
        %v393 = vsel %vm349, %v391, %v392
        %v402 = vsel %vm349, %v383, 0.0
        %v403 = vsel %vm349, %v386, 0.0
        %v404 = vsel %vm349, %v389, 0.0
        %v405 = vsel %vm349, %v392, 0.0
        %v406 = vadd.f32 %v325, %v384
        %v407 = vadd.f32 %v326, %v402
        %v408 = vadd.f32 %v327, %v387
        %v409 = vadd.f32 %v328, %v403
        %v410 = vadd.f32 %v329, %v390
        %v411 = vadd.f32 %v330, %v404
        %v412 = vadd.f32 %v331, %v393
        %v413 = vadd.f32 %v332, %v405
        %v414 = vmul.f32 %v374, %v374
        %v415 = vmul.f32 %v375, %v375
        %v416 = vmul.f32 %v376, %v376
        %v417 = vmul.f32 %v377, %v377
        %v418 = vmul.f32 %v378, %v378
        %v419 = vmul.f32 %v379, %v379
        %v420 = vmul.f32 %v380, %v380
        %v421 = vmul.f32 %v381, %v381
        %v422 = vmul.f32 %v406, %v406
        %v423 = vmul.f32 %v407, %v407
        %v424 = vmul.f32 %v408, %v408
        %v425 = vmul.f32 %v409, %v409
        %v426 = vmul.f32 %v410, %v410
        %v427 = vmul.f32 %v411, %v411
        %v428 = vmul.f32 %v412, %v412
        %v429 = vmul.f32 %v413, %v413
        %v430 = vadd.f32 %v414, %v422
        %v431 = vadd.f32 %v415, %v423
        %v432 = vadd.f32 %v416, %v424
        %v433 = vadd.f32 %v417, %v425
        %v434 = vadd.f32 %v418, %v426
        %v435 = vadd.f32 %v419, %v427
        %v436 = vadd.f32 %v420, %v428
        %v437 = vadd.f32 %v421, %v429
        %v438 = vadd.f32 %v430, 1e-06
        %v439 = vadd.f32 %v431, 1e-06
        %v440 = vadd.f32 %v432, 1e-06
        %v441 = vadd.f32 %v433, 1e-06
        %v442 = vadd.f32 %v434, 1e-06
        %v443 = vadd.f32 %v435, 1e-06
        %v444 = vadd.f32 %v436, 1e-06
        %v445 = vadd.f32 %v437, 1e-06
        %v446 = vrsqrt.pop %v438
        %v447 = vmul.f32 %v438, %v446
        %vm448 = vcmp.eq.f32.partialorder %v438, inf
        %v449 = vsel %vm448, %v438, %v447
        %vm450 = vcmp.eq.f32.partialorder %v438, 0.0
        %v451 = vand.u32 %v438, 2147483648
        %v452 = vsel %vm450, %v451, %v449
        %v453 = vrsqrt.pop %v439
        %v454 = vmul.f32 %v439, %v453
        %vm455 = vcmp.eq.f32.partialorder %v439, inf
        %v456 = vsel %vm455, %v439, %v454
        %vm457 = vcmp.eq.f32.partialorder %v439, 0.0
        %v458 = vand.u32 %v439, 2147483648
        %v459 = vsel %vm457, %v458, %v456
        %v460 = vrsqrt.pop %v440
        %v461 = vmul.f32 %v440, %v460
        %vm462 = vcmp.eq.f32.partialorder %v440, inf
        %v463 = vsel %vm462, %v440, %v461
        %vm464 = vcmp.eq.f32.partialorder %v440, 0.0
        %v465 = vand.u32 %v440, 2147483648
        %v466 = vsel %vm464, %v465, %v463
        %v467 = vrsqrt.pop %v441
        %v468 = vmul.f32 %v441, %v467
        %vm469 = vcmp.eq.f32.partialorder %v441, inf
        %v470 = vsel %vm469, %v441, %v468
        %vm471 = vcmp.eq.f32.partialorder %v441, 0.0
        %v472 = vand.u32 %v441, 2147483648
        %v473 = vsel %vm471, %v472, %v470
        %v474 = vrsqrt.pop %v442
        %v475 = vmul.f32 %v442, %v474
        %vm476 = vcmp.eq.f32.partialorder %v442, inf
        %v477 = vsel %vm476, %v442, %v475
        %vm478 = vcmp.eq.f32.partialorder %v442, 0.0
        %v479 = vand.u32 %v442, 2147483648
        %v480 = vsel %vm478, %v479, %v477
        %v481 = vrsqrt.pop %v443
        %v482 = vmul.f32 %v443, %v481
        %vm483 = vcmp.eq.f32.partialorder %v443, inf
        %v484 = vsel %vm483, %v443, %v482
        %vm485 = vcmp.eq.f32.partialorder %v443, 0.0
        %v486 = vand.u32 %v443, 2147483648
        %v487 = vsel %vm485, %v486, %v484
        %v488 = vrsqrt.pop %v444
        %v489 = vmul.f32 %v444, %v488
        %vm490 = vcmp.eq.f32.partialorder %v444, inf
        %v491 = vsel %vm490, %v444, %v489
        %vm492 = vcmp.eq.f32.partialorder %v444, 0.0
        %v493 = vand.u32 %v444, 2147483648
        %v494 = vsel %vm492, %v493, %v491
        %v495 = vrsqrt.pop %v445
        %v496 = vmul.f32 %v445, %v495
        %vm497 = vcmp.eq.f32.partialorder %v445, inf
        %v498 = vsel %vm497, %v445, %v496
        %vm499 = vcmp.eq.f32.partialorder %v445, 0.0
        %v500 = vand.u32 %v445, 2147483648
        %v501 = vsel %vm499, %v500, %v498
        %vm502 = vcmask 130048
        %503 = vst.msk [vmem:[%s135] sm:$0xff] %vm502, %v452
        %504 = vst.msk [vmem:[%s135 + $0x8] sm:$0xff] %vm502, %v459
        %505 = vst.msk [vmem:[%s135 + $0x10] sm:$0xff] %vm502, %v466
        %506 = vst.msk [vmem:[%s135 + $0x18] sm:$0xff] %vm502, %v473
        %507 = vst.msk [vmem:[%s135 + $0x20] sm:$0xff] %vm502, %v480
        %508 = vst.msk [vmem:[%s135 + $0x28] sm:$0xff] %vm502, %v487
        %509 = vst.msk [vmem:[%s135 + $0x30] sm:$0xff] %vm502, %v494
        %510 = vst.msk [vmem:[%s135 + $0x38] sm:$0xff] %vm502, %v501
        %s511 = sand.u32 %s52, 1
        %s512 = scalar_lea.sflag [#allocation4], %s511
        %s513 = sand.u32 %s52, 1
        %s514 = smul.addr %s513, 64
        %s515 = scalar_lea.vmem [#allocation5], %s514
        // Predicated region
        $region29: #{tpu_custom_call.1} parent=23 // pred_check
          %p516 = pneg %p62
        $region30: #{tpu_custom_call.1} parent=23 // pred_check_branch
          %518 = sbr.rel (%p516) target = $region32
        $region31: #{tpu_custom_call.1} parent=23 // pred_region
          %s519 = smul.u32 4, %s18
          %s521 = ssub.s32 1024, 1024
          %522 = vsyncadd %s512, %s521
          %s523 = smul.addr %s519, 2
          %s524 = smul.addr %s523, 128
          %s525 = scalar_lea.hbm %s1, %s524
          %s526 = sshll.u32 %s515, 4
          %s527 = int_to_ptr.vmem [resolvable:$true] %s526
          %532 = dma.vmem_to_hbm [thread:$0]  %s527, 1024, %s525, %s512, 128, 128, 8
        $region32: #{tpu_custom_call.1} parent=23 // pred_fallthru
          _
      $region24: #{tpu_custom_call.1} parent=5 // pred_fallthru
        _
      %p533 = scmp.le.s32.totalorder 2, %s13
      // Predicated region
      $region33: #{tpu_custom_call.1} parent=5 // pred_check
        %p534 = pneg %p533
      $region34: #{tpu_custom_call.1} parent=5 // pred_check_branch
        %536 = sbr.rel (%p534) target = $region36
      $region35: #{tpu_custom_call.1} parent=5 // pred_region
        %s537 = ssub.s32 %s13, 2
        // Predicated region
        $region37: #{tpu_custom_call.1} parent=35 // pred_check
          %p538 = pneg %p68
        $region38: #{tpu_custom_call.1} parent=35 // pred_check_branch
          %540 = sbr.rel (%p538) target = $region40
        $region39: #{tpu_custom_call.1} parent=35 // pred_region
          %s541 = sand.u32 %s53, 1
          %s542 = scalar_lea.sflag [#allocation4], %s541
          %s543 = sand.u32 %s53, 1
          %s544 = smul.addr %s543, 64
          %s545 = scalar_lea.vmem [#allocation5], %s544
          %546 = dma.done %s542, 1024
        $region40: #{tpu_custom_call.1} parent=35 // pred_fallthru
          _
      $region36: #{tpu_custom_call.1} parent=5 // pred_fallthru
        _
    $region6: #{tpu_custom_call.1} parent=1 // loop_footer
      %s17 = sadd.s32 1, %s13
    $region7: #{tpu_custom_call.1} parent=1 // loop_footer_branch
      %12 = sbr.rel target = $region3
    $region8: #{tpu_custom_call.1} parent=1 // loop_exit
      _
    %547 = vsyncpa [#allocation3], 1
    %s548 = scalar_lea.sflag [#allocation3], 1
    %549 = vsyncpa %s548, 1
    %550 = vsyncpa [#allocation4], 1
    %s551 = scalar_lea.sflag [#allocation4], 1
    %552 = vsyncpa %s551, 1

</llo_original>
